<compile_context>
chip_gen: v7x
topology: tpu7x:2x2x1
jax: 0.10.0
libtpu: 0.0.40
codegen_flags: <defaults>
</compile_context>

<pallas_src>
import jax
import jax.numpy as jnp
import numpy as np
from jax.experimental import pallas as pl
from jax.experimental.pallas import tpu as pltpu

_LANE = 128
_SUBLANE = 8
# ~2 MiB of f32 per input block (x2 inputs x2 pipeline buffers ~ 8 MiB VMEM).
_MAX_BLOCK_ELEMS = 512 * 1024


def _round_up(x, m):
    return (x + m - 1) // m * m


def _dice_bce_kernel(x_ref, t_ref, bce_ref, inter_ref, total_ref):
    """Per-block partial sums for BCE / dice, accumulated over spatial chunks."""
    j = pl.program_id(1)  # spatial-chunk (reduction) axis, declared "arbitrary"

    @pl.when(j == 0)
    def _():
        bce_ref[...] = jnp.zeros_like(bce_ref)
        inter_ref[...] = jnp.zeros_like(inter_ref)
        total_ref[...] = jnp.zeros_like(total_ref)

    x = x_ref[...].astype(jnp.float32)
    t = t_ref[...].astype(jnp.float32)

    # Shared-exp stable formulation: one exp, one log, one divide per element.
    e = jnp.exp(-jnp.abs(x))          # exp(-|x|) in (0, 1], never overflows
    log1pe = jnp.log(1.0 + e)
    # log(sigmoid(x)) and log(1 - sigmoid(x)), clamped at -100 like PyTorch BCE.
    log_p = jnp.maximum(jnp.minimum(x, 0.0) - log1pe, jnp.float32(-100.0))
    log_1mp = jnp.maximum(jnp.minimum(-x, 0.0) - log1pe, jnp.float32(-100.0))
    r = 1.0 / (1.0 + e)
    p = jnp.where(x >= 0.0, r, e * r)  # sigmoid(x), reusing e

    bce_elem = -(t * log_p + (1.0 - t) * log_1mp)

    # Per-sample partial reductions over this spatial chunk (lanes -> scalar
    # per sublane row).
    bce_ps = jnp.sum(bce_elem, axis=-1, keepdims=True)                    # (B, 1)
    inter_ps = jnp.sum(p * t, axis=-1, keepdims=True)                     # (B, 1)
    total_ps = (jnp.sum(p, axis=-1, keepdims=True)
                + jnp.sum(t, axis=-1, keepdims=True))                     # (B, 1)

    # Lane-dense (B, 128) accumulating stores (unmasked vst); epilogue reads
    # lane 0.
    bce_ref[...] += jnp.broadcast_to(bce_ps, bce_ref.shape)
    inter_ref[...] += jnp.broadcast_to(inter_ps, inter_ref.shape)
    total_ref[...] += jnp.broadcast_to(total_ps, total_ref.shape)


def dice_bce_loss(inputs, targets, smooth=1.0):
    """inputs, targets: (N, C, H, W) arrays (NCHW, matching PyTorch)."""
    N = inputs.shape[0]
    D = 1
    for s in inputs.shape[1:]:
        D *= s

    x2 = inputs.reshape(N, D).astype(jnp.float32)
    t2 = targets.reshape(N, D).astype(jnp.float32)

    # --- choose block sizes (lane-dense, sublane-full, ~2 MiB per block) ----
    d_pad128 = _round_up(D, _LANE)
    if d_pad128 * _SUBLANE <= _MAX_BLOCK_ELEMS:
        d_chunk = d_pad128
        b_tile = (_MAX_BLOCK_ELEMS // d_chunk) // _SUBLANE * _SUBLANE
        b_tile = max(_SUBLANE, min(b_tile, _round_up(N, _SUBLANE)))
    else:
        b_tile = _SUBLANE
        d_chunk = (_MAX_BLOCK_ELEMS // _SUBLANE) // _LANE * _LANE

    n_pad = _round_up(N, b_tile)
    d_pad = _round_up(D, d_chunk)

    if n_pad != N or d_pad != D:
        # Pad logits with a huge negative value and targets with 0:
        # sigmoid -> 0, clamped BCE term -> exactly 0, so padded elements
        # contribute nothing to any partial sum.
        x2 = jnp.pad(x2, ((0, n_pad - N), (0, d_pad - D)),
                     constant_values=-1e9)
        t2 = jnp.pad(t2, ((0, n_pad - N), (0, d_pad - D)),
                     constant_values=0.0)

    nb = n_pad // b_tile
    nd = d_pad // d_chunk

    out_shape = (
        jax.ShapeDtypeStruct((n_pad, _LANE), jnp.float32),  # per-sample BCE sum
        jax.ShapeDtypeStruct((n_pad, _LANE), jnp.float32),  # per-sample intersection
        jax.ShapeDtypeStruct((n_pad, _LANE), jnp.float32),  # per-sample total
    )

    bce_ps, inter_ps, total_ps = pl.pallas_call(
        _dice_bce_kernel,
        out_shape=out_shape,
        grid_spec=pltpu.PrefetchScalarGridSpec(
            num_scalar_prefetch=0,
            grid=(nb, nd),
            in_specs=[
                pl.BlockSpec((b_tile, d_chunk), lambda i, j: (i, j)),
                pl.BlockSpec((b_tile, d_chunk), lambda i, j: (i, j)),
            ],
            out_specs=[
                pl.BlockSpec((b_tile, _LANE), lambda i, j: (i, 0)),
                pl.BlockSpec((b_tile, _LANE), lambda i, j: (i, 0)),
                pl.BlockSpec((b_tile, _LANE), lambda i, j: (i, 0)),
            ],
        ),
        compiler_params=pltpu.CompilerParams(
            # Batch chunks are independent -> shardable across v7x's 2 TCs;
            # spatial chunks accumulate into the resident output block.
            dimension_semantics=("parallel", "arbitrary"),
            vmem_limit_bytes=32 * 1024 * 1024,
        ),
    )(x2, t2)

    # Tiny JAX epilogue: finalize the scalar loss from lane-0 partials.
    smooth = jnp.float32(smooth)
    bce_mean = jnp.sum(bce_ps[:N, 0]) / jnp.float32(N * D)
    inter = inter_ps[:N, 0]
    total = total_ps[:N, 0]
    dice = (2.0 * inter + smooth) / (total + smooth)
    return 0.8 * bce_mean - 0.2 * jnp.log(jnp.mean(dice))


def _reference(inputs, targets, smooth=1.0):
    """Pure-JAX reference mirroring the PyTorch forward."""
    p = jax.nn.sigmoid(inputs.astype(jnp.float32))
    t = targets.astype(jnp.float32)
    log_p = jnp.maximum(jnp.log(p), -100.0)
    log_1mp = jnp.maximum(jnp.log(1.0 - p), -100.0)
    bce = jnp.mean(-(t * log_p + (1.0 - t) * log_1mp))
    intersection = jnp.sum(p * t, axis=(1, 2, 3))
    total = jnp.sum(p + t, axis=(1, 2, 3))
    dice = (2.0 * intersection + smooth) / (total + smooth)
    return 0.8 * bce - 0.2 * jnp.log(jnp.mean(dice))


if __name__ == "__main__":
    key = jax.random.PRNGKey(0)
    k1, k2 = jax.random.split(key)

    N, C, H, W = 2, 4, 16, 16
    inputs = jax.random.normal(k1, (N, C, H, W), dtype=jnp.float32)
    # targets are binary masks in [0, 1]
    targets = (jax.random.uniform(k2, (N, C, H, W)) > 0.5).astype(jnp.float32)

    loss = dice_bce_loss(inputs, targets, smooth=1.0)
    loss = jax.block_until_ready(loss)

    ref = jax.block_until_ready(_reference(inputs, targets, smooth=1.0))
    np.testing.assert_allclose(np.asarray(loss), np.asarray(ref), rtol=1e-5, atol=1e-5)

    print("KERNEL_OK")
</pallas_src>

<mosaic_0001>
module attributes {stable_mosaic.version = 11 : i64} {
  func.func @_dice_bce_kernel(%arg0: i32, %arg1: i32, %arg2: memref<8x1024xf32, #tpu.memory_space<vmem>>, %arg3: memref<8x1024xf32, #tpu.memory_space<vmem>>, %arg4: memref<8x128xf32, #tpu.memory_space<vmem>>, %arg5: memref<8x128xf32, #tpu.memory_space<vmem>>, %arg6: memref<8x128xf32, #tpu.memory_space<vmem>>) attributes {dimension_semantics = [#tpu.dimension_semantics<parallel>, #tpu.dimension_semantics<arbitrary>], iteration_bounds = array<i64: 1, 1>, scalar_prefetch = 0 : i64, scratch_operands = 0 : i64, tpu.core_type = #tpu.core_type<tc>, window_params = [{transform_indices = @transform_0, window_bounds = array<i64: 8, 1024>}, {transform_indices = @transform_1, window_bounds = array<i64: 8, 1024>}, {transform_indices = @transform_2, window_bounds = array<i64: 8, 128>}, {transform_indices = @transform_3, window_bounds = array<i64: 8, 128>}, {transform_indices = @transform_4, window_bounds = array<i64: 8, 128>}]} {
    %c0_i32 = arith.constant 0 : i32
    %0 = arith.cmpi eq, %arg1, %c0_i32 : i32
    %1 = arith.extui %0 : i1 to i32
    %c0_i32_0 = arith.constant 0 : i32
    %2 = arith.cmpi ne, %1, %c0_i32_0 : i32
    scf.if %2 {
      %cst_31 = arith.constant 0.000000e+00 : f32
      %64 = vector.broadcast %cst_31 : f32 to vector<8x128xf32>
      %c0_32 = arith.constant 0 : index
      %c0_33 = arith.constant 0 : index
      %65 = vector.load %arg4[%c0_32, %c0_33] : memref<8x128xf32, #tpu.memory_space<vmem>>, vector<8x128xf32>
      tpu.vector_store %arg4[%c0_32, %c0_33], %64 {strides = array<i32>} : memref<8x128xf32, #tpu.memory_space<vmem>>, vector<8x128xf32>,
      %cst_34 = arith.constant 0.000000e+00 : f32
      %66 = vector.broadcast %cst_34 : f32 to vector<8x128xf32>
      %c0_35 = arith.constant 0 : index
      %c0_36 = arith.constant 0 : index
      %67 = vector.load %arg5[%c0_35, %c0_36] : memref<8x128xf32, #tpu.memory_space<vmem>>, vector<8x128xf32>
      tpu.vector_store %arg5[%c0_35, %c0_36], %66 {strides = array<i32>} : memref<8x128xf32, #tpu.memory_space<vmem>>, vector<8x128xf32>,
      %cst_37 = arith.constant 0.000000e+00 : f32
      %68 = vector.broadcast %cst_37 : f32 to vector<8x128xf32>
      %c0_38 = arith.constant 0 : index
      %c0_39 = arith.constant 0 : index
      %69 = vector.load %arg6[%c0_38, %c0_39] : memref<8x128xf32, #tpu.memory_space<vmem>>, vector<8x128xf32>
      tpu.vector_store %arg6[%c0_38, %c0_39], %68 {strides = array<i32>} : memref<8x128xf32, #tpu.memory_space<vmem>>, vector<8x128xf32>,
    } else {
    }
    %c0 = arith.constant 0 : index
    %c0_1 = arith.constant 0 : index
    %3 = vector.load %arg2[%c0, %c0_1] : memref<8x1024xf32, #tpu.memory_space<vmem>>, vector<8x1024xf32>
    %c0_2 = arith.constant 0 : index
    %c0_3 = arith.constant 0 : index
    %4 = vector.load %arg3[%c0_2, %c0_3] : memref<8x1024xf32, #tpu.memory_space<vmem>>, vector<8x1024xf32>
    %5 = math.absf %3 : vector<8x1024xf32>
    %cst = arith.constant 0.000000e+00 : f32
    %6 = vector.broadcast %cst : f32 to vector<8x1024xf32>
    %7 = arith.subf %6, %5 : vector<8x1024xf32>
    %8 = math.exp %7 : vector<8x1024xf32>
    %cst_4 = arith.constant 1.000000e+00 : f32
    %9 = vector.broadcast %cst_4 : f32 to vector<8x1024xf32>
    %10 = arith.addf %9, %8 : vector<8x1024xf32>
    %11 = math.log %10 : vector<8x1024xf32>
    %cst_5 = arith.constant 0.000000e+00 : f32
    %12 = vector.broadcast %cst_5 : f32 to vector<8x1024xf32>
    %13 = arith.minimumf %3, %12 : vector<8x1024xf32>
    %14 = arith.subf %13, %11 : vector<8x1024xf32>
    %cst_6 = arith.constant -1.000000e+02 : f32
    %15 = vector.broadcast %cst_6 : f32 to vector<8x1024xf32>
    %16 = arith.maximumf %14, %15 : vector<8x1024xf32>
    %cst_7 = arith.constant 0.000000e+00 : f32
    %17 = vector.broadcast %cst_7 : f32 to vector<8x1024xf32>
    %18 = arith.subf %17, %3 : vector<8x1024xf32>
    %cst_8 = arith.constant 0.000000e+00 : f32
    %19 = vector.broadcast %cst_8 : f32 to vector<8x1024xf32>
    %20 = arith.minimumf %18, %19 : vector<8x1024xf32>
    %21 = arith.subf %20, %11 : vector<8x1024xf32>
    %cst_9 = arith.constant -1.000000e+02 : f32
    %22 = vector.broadcast %cst_9 : f32 to vector<8x1024xf32>
    %23 = arith.maximumf %21, %22 : vector<8x1024xf32>
    %cst_10 = arith.constant 1.000000e+00 : f32
    %24 = vector.broadcast %cst_10 : f32 to vector<8x1024xf32>
    %25 = arith.addf %24, %8 : vector<8x1024xf32>
    %cst_11 = arith.constant 1.000000e+00 : f32
    %26 = vector.broadcast %cst_11 : f32 to vector<8x1024xf32>
    %27 = arith.divf %26, %25 : vector<8x1024xf32>
    %cst_12 = arith.constant 0.000000e+00 : f32
    %28 = vector.broadcast %cst_12 : f32 to vector<8x1024xf32>
    %29 = arith.cmpf oge, %3, %28 : vector<8x1024xf32>
    %30 = arith.mulf %8, %27 : vector<8x1024xf32>
    %31 = arith.select %29, %27, %30 : vector<8x1024xi1>, vector<8x1024xf32>
    %32 = arith.mulf %4, %16 : vector<8x1024xf32>
    %cst_13 = arith.constant 1.000000e+00 : f32
    %33 = vector.broadcast %cst_13 : f32 to vector<8x1024xf32>
    %34 = arith.subf %33, %4 : vector<8x1024xf32>
    %35 = arith.mulf %34, %23 : vector<8x1024xf32>
    %36 = arith.addf %32, %35 : vector<8x1024xf32>
    %cst_14 = arith.constant 0.000000e+00 : f32
    %37 = vector.broadcast %cst_14 : f32 to vector<8x1024xf32>
    %38 = arith.subf %37, %36 : vector<8x1024xf32>
    %cst_15 = arith.constant dense<0.000000e+00> : vector<8xf32>
    %39 = vector.multi_reduction <add>, %38, %cst_15 [1] : vector<8x1024xf32> to vector<8xf32>
    %40 = vector.shape_cast %39 : vector<8xf32> to vector<8x1xf32>
    %41 = arith.mulf %31, %4 : vector<8x1024xf32>
    %cst_16 = arith.constant dense<0.000000e+00> : vector<8xf32>
    %42 = vector.multi_reduction <add>, %41, %cst_16 [1] : vector<8x1024xf32> to vector<8xf32>
    %43 = vector.shape_cast %42 : vector<8xf32> to vector<8x1xf32>
    %cst_17 = arith.constant dense<0.000000e+00> : vector<8xf32>
    %44 = vector.multi_reduction <add>, %31, %cst_17 [1] : vector<8x1024xf32> to vector<8xf32>
    %45 = vector.shape_cast %44 : vector<8xf32> to vector<8x1xf32>
    %cst_18 = arith.constant dense<0.000000e+00> : vector<8xf32>
    %46 = vector.multi_reduction <add>, %4, %cst_18 [1] : vector<8x1024xf32> to vector<8xf32>
    %47 = vector.shape_cast %46 : vector<8xf32> to vector<8x1xf32>
    %48 = arith.addf %45, %47 : vector<8x1xf32>
    %c0_19 = arith.constant 0 : index
    %c0_20 = arith.constant 0 : index
    %49 = vector.load %arg4[%c0_19, %c0_20] : memref<8x128xf32, #tpu.memory_space<vmem>>, vector<8x128xf32>
    %50 = vector.shape_cast %40 : vector<8x1xf32> to vector<8x1xf32>
    %51 = vector.broadcast %50 : vector<8x1xf32> to vector<8x128xf32>
    %52 = arith.addf %49, %51 : vector<8x128xf32>
    %c0_21 = arith.constant 0 : index
    %c0_22 = arith.constant 0 : index
    %53 = vector.load %arg4[%c0_21, %c0_22] : memref<8x128xf32, #tpu.memory_space<vmem>>, vector<8x128xf32>
    tpu.vector_store %arg4[%c0_21, %c0_22], %52 {strides = array<i32>} : memref<8x128xf32, #tpu.memory_space<vmem>>, vector<8x128xf32>,
    %c0_23 = arith.constant 0 : index
    %c0_24 = arith.constant 0 : index
    %54 = vector.load %arg5[%c0_23, %c0_24] : memref<8x128xf32, #tpu.memory_space<vmem>>, vector<8x128xf32>
    %55 = vector.shape_cast %43 : vector<8x1xf32> to vector<8x1xf32>
    %56 = vector.broadcast %55 : vector<8x1xf32> to vector<8x128xf32>
    %57 = arith.addf %54, %56 : vector<8x128xf32>
    %c0_25 = arith.constant 0 : index
    %c0_26 = arith.constant 0 : index
    %58 = vector.load %arg5[%c0_25, %c0_26] : memref<8x128xf32, #tpu.memory_space<vmem>>, vector<8x128xf32>
    tpu.vector_store %arg5[%c0_25, %c0_26], %57 {strides = array<i32>} : memref<8x128xf32, #tpu.memory_space<vmem>>, vector<8x128xf32>,
    %c0_27 = arith.constant 0 : index
    %c0_28 = arith.constant 0 : index
    %59 = vector.load %arg6[%c0_27, %c0_28] : memref<8x128xf32, #tpu.memory_space<vmem>>, vector<8x128xf32>
    %60 = vector.shape_cast %48 : vector<8x1xf32> to vector<8x1xf32>
    %61 = vector.broadcast %60 : vector<8x1xf32> to vector<8x128xf32>
    %62 = arith.addf %59, %61 : vector<8x128xf32>
    %c0_29 = arith.constant 0 : index
    %c0_30 = arith.constant 0 : index
    %63 = vector.load %arg6[%c0_29, %c0_30] : memref<8x128xf32, #tpu.memory_space<vmem>>, vector<8x128xf32>
    tpu.vector_store %arg6[%c0_29, %c0_30], %62 {strides = array<i32>} : memref<8x128xf32, #tpu.memory_space<vmem>>, vector<8x128xf32>,
    return
  }
  func.func @transform_0(%arg0: i32, %arg1: i32) -> (i32, i32) {
    %c0_i32 = arith.constant 0 : i32
    return %arg0, %arg1 : i32, i32
  }
  func.func @transform_1(%arg0: i32, %arg1: i32) -> (i32, i32) {
    %c0_i32 = arith.constant 0 : i32
    return %arg0, %arg1 : i32, i32
  }
  func.func @transform_2(%arg0: i32, %arg1: i32) -> (i32, i32) {
    %c0_i32 = arith.constant 0 : i32
    %c0_i32_0 = arith.constant 0 : i32
    return %arg0, %c0_i32 : i32, i32
  }
  func.func @transform_3(%arg0: i32, %arg1: i32) -> (i32, i32) {
    %c0_i32 = arith.constant 0 : i32
    %c0_i32_0 = arith.constant 0 : i32
    return %arg0, %c0_i32 : i32, i32
  }
  func.func @transform_4(%arg0: i32, %arg1: i32) -> (i32, i32) {
    %c0_i32 = arith.constant 0 : i32
    %c0_i32_0 = arith.constant 0 : i32
    return %arg0, %c0_i32 : i32, i32
  }
}

</mosaic_0001>

<llo_original>
// kernel: tpu_custom_call.1
$region0: #{tpu_custom_call.1}
  #allocation0 [shape = 'u32[]', space=smem, size = 0x4, offset = 0x4, fixed_abs, tag = 'smem constant byte address 0x4 - core index']
  #allocation1 [shape = 'u32[144,128]{1,0:T(1,128)}', space=vmem, size = 0x12000, scoped, tag = 'internal scratch']
  %s0 = inlined_call_operand.hbm [shape: f32[8,1024], index: 0, kind: input, shape index: {}]
  %s1 = inlined_call_operand.hbm [shape: f32[8,1024], index: 1, kind: input, shape index: {}]
  %s2 = inlined_call_operand.hbm [shape: f32[8,128], index: 2, kind: output, shape index: {0}]
  %s3 = inlined_call_operand.hbm [shape: f32[8,128], index: 3, kind: output, shape index: {1}]
  %s4 = inlined_call_operand.hbm [shape: f32[8,128], index: 4, kind: output, shape index: {2}]
  %5 = xla_tuple %s2, %s3, %s4
  %s6 = sld [smem:[#allocation0]]
  $region46: #{tpu_custom_call.1} parent=0
    _
  %s8 = ssub.s32 1, %s6
  %s9 = scalar_select 0, %s8, %s6
  $region1: #{tpu_custom_call.1} parent=0
    #allocation2 [shape = 'u8[32768]{0}', space=vmem, size = 0x8000, scoped, tag = 'input window, operand 0, single buffered']
    #allocation3 [shape = 's32[1]{0}', space=sflag, size = 0x4, scoped, tag = 'scoped memory for tpu_custom_call.1']
    #allocation4 [shape = 's32[1]{0}', space=sflag, size = 0x4, scoped, tag = 'scoped memory for tpu_custom_call.1']
    #allocation5 [shape = 'u8[32768]{0}', space=vmem, size = 0x8000, scoped, tag = 'input window, operand 1, single buffered']
    #allocation6 [shape = 's32[1]{0}', space=sflag, size = 0x4, scoped, tag = 'scoped memory for tpu_custom_call.1']
    #allocation7 [shape = 'u8[4096]{0}', space=vmem, size = 0x1000, scoped, tag = 'output window, operand 0, single buffered']
    #allocation8 [shape = 'u8[4096]{0}', space=vmem, size = 0x1000, scoped, tag = 'output window, operand 1, single buffered']
    #allocation9 [shape = 's32[1]{0}', space=sflag, size = 0x4, scoped, tag = 'scoped memory for tpu_custom_call.1']
    #allocation10 [shape = 'u8[4096]{0}', space=vmem, size = 0x1000, scoped, tag = 'output window, operand 2, single buffered']
    %10 = vsyncpa [#allocation3], 0
    %11 = vsyncpa [#allocation6], 0
    %12 = vsyncpa [#allocation4], 0
    %13 = vsyncpa [#allocation9], 0
    // Predicated region
    $region2: #{tpu_custom_call.1} parent=1 // pred_check
      _
    $region3: #{tpu_custom_call.1} parent=1 // pred_check_branch
      %15 = sbr.rel (0) target = $region5
    $region4: #{tpu_custom_call.1} parent=1 // pred_region
      %s17 = ssub.s32 1024, 1024
      %18 = vsyncadd [#allocation3], %s17
      %s20 = sshll.u32 [#allocation2], 4
      %s21 = int_to_ptr.vmem [resolvable:$true] %s20
      %23 = dma.hbm_to_vmem [thread:$0]  %s0, 1024, %s21, [#allocation3]
    $region5: #{tpu_custom_call.1} parent=1 // pred_fallthru
      _
    // Predicated region
    $region6: #{tpu_custom_call.1} parent=1 // pred_check
      _
    $region7: #{tpu_custom_call.1} parent=1 // pred_check_branch
      %25 = sbr.rel (0) target = $region9
    $region8: #{tpu_custom_call.1} parent=1 // pred_region
      %s27 = ssub.s32 1024, 1024
      %28 = vsyncadd [#allocation6], %s27
      %s30 = sshll.u32 [#allocation5], 4
      %s31 = int_to_ptr.vmem [resolvable:$true] %s30
      %33 = dma.hbm_to_vmem [thread:$0]  %s1, 1024, %s31, [#allocation6]
    $region9: #{tpu_custom_call.1} parent=1 // pred_fallthru
      _
    // Predicated region
    $region10: #{tpu_custom_call.1} parent=1 // pred_check
      _
    $region11: #{tpu_custom_call.1} parent=1 // pred_check_branch
      %35 = sbr.rel (0) target = $region13
    $region12: #{tpu_custom_call.1} parent=1 // pred_region
      %36 = dma.done [#allocation3], 1024
    $region13: #{tpu_custom_call.1} parent=1 // pred_fallthru
      _
    // Predicated region
    $region14: #{tpu_custom_call.1} parent=1 // pred_check
      _
    $region15: #{tpu_custom_call.1} parent=1 // pred_check_branch
      %38 = sbr.rel (0) target = $region17
    $region16: #{tpu_custom_call.1} parent=1 // pred_region
      %39 = dma.done [#allocation6], 1024
    $region17: #{tpu_custom_call.1} parent=1 // pred_fallthru
      _
    %p40 = scmp.eq.s32.totalorder 0, 0
    // Predicated region
    $region18: #{tpu_custom_call.1} parent=1 // pred_check
      %p41 = pneg %p40
    $region19: #{tpu_custom_call.1} parent=1 // pred_check_branch
      %43 = sbr.rel (%p41) target = $region21
    $region20: #{tpu_custom_call.1} parent=1 // pred_region
      %44 = vst [vmem:[#allocation7] sm:$0xff] 0.0
      %45 = vst [vmem:[#allocation8] sm:$0xff] 0.0
      %46 = vst [vmem:[#allocation10] sm:$0xff] 0.0
    $region21: #{tpu_custom_call.1} parent=1 // pred_fallthru
      _
    %v47 = vld [vmem:[#allocation2] sm:$0xff]
    %v48 = vld [vmem:[#allocation2 + $0x8] sm:$0xff]
    %v49 = vld [vmem:[#allocation2 + $0x10] sm:$0xff]
    %v50 = vld [vmem:[#allocation2 + $0x18] sm:$0xff]
    %v51 = vld [vmem:[#allocation2 + $0x20] sm:$0xff]
    %v52 = vld [vmem:[#allocation2 + $0x28] sm:$0xff]
    %v53 = vld [vmem:[#allocation2 + $0x30] sm:$0xff]
    %v54 = vld [vmem:[#allocation2 + $0x38] sm:$0xff]
    %v55 = vld [vmem:[#allocation5] sm:$0xff]
    %v56 = vld [vmem:[#allocation5 + $0x8] sm:$0xff]
    %v57 = vld [vmem:[#allocation5 + $0x10] sm:$0xff]
    %v58 = vld [vmem:[#allocation5 + $0x18] sm:$0xff]
    %v59 = vld [vmem:[#allocation5 + $0x20] sm:$0xff]
    %v60 = vld [vmem:[#allocation5 + $0x28] sm:$0xff]
    %v61 = vld [vmem:[#allocation5 + $0x30] sm:$0xff]
    %v62 = vld [vmem:[#allocation5 + $0x38] sm:$0xff]
    %v63 = vand.u32 2147483647, %v47
    %v64 = vand.u32 2147483647, %v48
    %v65 = vand.u32 2147483647, %v49
    %v66 = vand.u32 2147483647, %v50
    %v67 = vand.u32 2147483647, %v51
    %v68 = vand.u32 2147483647, %v52
    %v69 = vand.u32 2147483647, %v53
    %v70 = vand.u32 2147483647, %v54
    %v71 = vsub.f32 0.0, %v63
    %v72 = vsub.f32 0.0, %v64
    %v73 = vsub.f32 0.0, %v65
    %v74 = vsub.f32 0.0, %v66
    %v75 = vsub.f32 0.0, %v67
    %v76 = vsub.f32 0.0, %v68
    %v77 = vsub.f32 0.0, %v69
    %v78 = vsub.f32 0.0, %v70
    %v79 = vmul.f32 %v71, 1.442695
    %v80 = vpow.pop %v79
    %v81 = vmul.f32 %v72, 1.442695
    %v82 = vpow.pop %v81
    %v83 = vmul.f32 %v73, 1.442695
    %v84 = vpow.pop %v83
    %v85 = vmul.f32 %v74, 1.442695
    %v86 = vpow.pop %v85
    %v87 = vmul.f32 %v75, 1.442695
    %v88 = vpow.pop %v87
    %v89 = vmul.f32 %v76, 1.442695
    %v90 = vpow.pop %v89
    %v91 = vmul.f32 %v77, 1.442695
    %v92 = vpow.pop %v91
    %v93 = vmul.f32 %v78, 1.442695
    %v94 = vpow.pop %v93
    %v95 = vadd.f32 %v80, 1.0
    %v96 = vadd.f32 %v82, 1.0
    %v97 = vadd.f32 %v84, 1.0
    %v98 = vadd.f32 %v86, 1.0
    %v99 = vadd.f32 %v88, 1.0
    %v100 = vadd.f32 %v90, 1.0
    %v101 = vadd.f32 %v92, 1.0
    %v102 = vadd.f32 %v94, 1.0
    %v103 = vlog2.pop %v95
    %v104 = vmul.f32 %v103, 0.6931472
    %v105 = vlog2.pop %v96
    %v106 = vmul.f32 %v105, 0.6931472
    %v107 = vlog2.pop %v97
    %v108 = vmul.f32 %v107, 0.6931472
    %v109 = vlog2.pop %v98
    %v110 = vmul.f32 %v109, 0.6931472
    %v111 = vlog2.pop %v99
    %v112 = vmul.f32 %v111, 0.6931472
    %v113 = vlog2.pop %v100
    %v114 = vmul.f32 %v113, 0.6931472
    %v115 = vlog2.pop %v101
    %v116 = vmul.f32 %v115, 0.6931472
    %v117 = vlog2.pop %v102
    %v118 = vmul.f32 %v117, 0.6931472
    %v119 = vmin.f32 %v47, 0.0
    %v120 = vmin.f32 %v48, 0.0
    %v121 = vmin.f32 %v49, 0.0
    %v122 = vmin.f32 %v50, 0.0
    %v123 = vmin.f32 %v51, 0.0
    %v124 = vmin.f32 %v52, 0.0
    %v125 = vmin.f32 %v53, 0.0
    %v126 = vmin.f32 %v54, 0.0
    %v127 = vsub.f32 %v119, %v104
    %v128 = vsub.f32 %v120, %v106
    %v129 = vsub.f32 %v121, %v108
    %v130 = vsub.f32 %v122, %v110
    %v131 = vsub.f32 %v123, %v112
    %v132 = vsub.f32 %v124, %v114
    %v133 = vsub.f32 %v125, %v116
    %v134 = vsub.f32 %v126, %v118
    %v135 = vmax.f32 %v127, -100.0
    %v136 = vmax.f32 %v128, -100.0
    %v137 = vmax.f32 %v129, -100.0
    %v138 = vmax.f32 %v130, -100.0
    %v139 = vmax.f32 %v131, -100.0
    %v140 = vmax.f32 %v132, -100.0
    %v141 = vmax.f32 %v133, -100.0
    %v142 = vmax.f32 %v134, -100.0
    %v143 = vsub.f32 0.0, %v47
    %v144 = vsub.f32 0.0, %v48
    %v145 = vsub.f32 0.0, %v49
    %v146 = vsub.f32 0.0, %v50
    %v147 = vsub.f32 0.0, %v51
    %v148 = vsub.f32 0.0, %v52
    %v149 = vsub.f32 0.0, %v53
    %v150 = vsub.f32 0.0, %v54
    %v151 = vmin.f32 %v143, 0.0
    %v152 = vmin.f32 %v144, 0.0
    %v153 = vmin.f32 %v145, 0.0
    %v154 = vmin.f32 %v146, 0.0
    %v155 = vmin.f32 %v147, 0.0
    %v156 = vmin.f32 %v148, 0.0
    %v157 = vmin.f32 %v149, 0.0
    %v158 = vmin.f32 %v150, 0.0
    %v159 = vsub.f32 %v151, %v104
    %v160 = vsub.f32 %v152, %v106
    %v161 = vsub.f32 %v153, %v108
    %v162 = vsub.f32 %v154, %v110
    %v163 = vsub.f32 %v155, %v112
    %v164 = vsub.f32 %v156, %v114
    %v165 = vsub.f32 %v157, %v116
    %v166 = vsub.f32 %v158, %v118
    %v167 = vmax.f32 %v159, -100.0
    %v168 = vmax.f32 %v160, -100.0
    %v169 = vmax.f32 %v161, -100.0
    %v170 = vmax.f32 %v162, -100.0
    %v171 = vmax.f32 %v163, -100.0
    %v172 = vmax.f32 %v164, -100.0
    %v173 = vmax.f32 %v165, -100.0
    %v174 = vmax.f32 %v166, -100.0
    %v175 = vrcp.pop %v95
    %v176 = vmul.f32 1.0, %v175
    %v177 = vrcp.pop %v96
    %v178 = vmul.f32 1.0, %v177
    %v179 = vrcp.pop %v97
    %v180 = vmul.f32 1.0, %v179
    %v181 = vrcp.pop %v98
    %v182 = vmul.f32 1.0, %v181
    %v183 = vrcp.pop %v99
    %v184 = vmul.f32 1.0, %v183
    %v185 = vrcp.pop %v100
    %v186 = vmul.f32 1.0, %v185
    %v187 = vrcp.pop %v101
    %v188 = vmul.f32 1.0, %v187
    %v189 = vrcp.pop %v102
    %v190 = vmul.f32 1.0, %v189
    %vm191 = vcmp.ge.f32.partialorder %v47, 0.0
    %vm192 = vcmp.ge.f32.partialorder %v48, 0.0
    %vm193 = vcmp.ge.f32.partialorder %v49, 0.0
    %vm194 = vcmp.ge.f32.partialorder %v50, 0.0
    %vm195 = vcmp.ge.f32.partialorder %v51, 0.0
    %vm196 = vcmp.ge.f32.partialorder %v52, 0.0
    %vm197 = vcmp.ge.f32.partialorder %v53, 0.0
    %vm198 = vcmp.ge.f32.partialorder %v54, 0.0
    %v199 = vmul.f32 %v80, %v176
    %v200 = vmul.f32 %v82, %v178
    %v201 = vmul.f32 %v84, %v180
    %v202 = vmul.f32 %v86, %v182
    %v203 = vmul.f32 %v88, %v184
    %v204 = vmul.f32 %v90, %v186
    %v205 = vmul.f32 %v92, %v188
    %v206 = vmul.f32 %v94, %v190
    %v207 = vsel %vm191, %v176, %v199
    %v208 = vsel %vm192, %v178, %v200
    %v209 = vsel %vm193, %v180, %v201
    %v210 = vsel %vm194, %v182, %v202
    %v211 = vsel %vm195, %v184, %v203
    %v212 = vsel %vm196, %v186, %v204
    %v213 = vsel %vm197, %v188, %v205
    %v214 = vsel %vm198, %v190, %v206
    %v215 = vmul.f32 %v55, %v135
    %v216 = vmul.f32 %v56, %v136
    %v217 = vmul.f32 %v57, %v137
    %v218 = vmul.f32 %v58, %v138
    %v219 = vmul.f32 %v59, %v139
    %v220 = vmul.f32 %v60, %v140
    %v221 = vmul.f32 %v61, %v141
    %v222 = vmul.f32 %v62, %v142
    %v223 = vsub.f32 1.0, %v55
    %v224 = vsub.f32 1.0, %v56
    %v225 = vsub.f32 1.0, %v57
    %v226 = vsub.f32 1.0, %v58
    %v227 = vsub.f32 1.0, %v59
    %v228 = vsub.f32 1.0, %v60
    %v229 = vsub.f32 1.0, %v61
    %v230 = vsub.f32 1.0, %v62
    %v231 = vmul.f32 %v223, %v167
    %v232 = vmul.f32 %v224, %v168
    %v233 = vmul.f32 %v225, %v169
    %v234 = vmul.f32 %v226, %v170
    %v235 = vmul.f32 %v227, %v171
    %v236 = vmul.f32 %v228, %v172
    %v237 = vmul.f32 %v229, %v173
    %v238 = vmul.f32 %v230, %v174
    %v239 = vadd.f32 %v215, %v231
    %v240 = vadd.f32 %v216, %v232
    %v241 = vadd.f32 %v217, %v233
    %v242 = vadd.f32 %v218, %v234
    %v243 = vadd.f32 %v219, %v235
    %v244 = vadd.f32 %v220, %v236
    %v245 = vadd.f32 %v221, %v237
    %v246 = vadd.f32 %v222, %v238
    %v247 = vsub.f32 0.0, %v239
    %v248 = vsub.f32 0.0, %v240
    %v249 = vsub.f32 0.0, %v241
    %v250 = vsub.f32 0.0, %v242
    %v251 = vsub.f32 0.0, %v243
    %v252 = vsub.f32 0.0, %v244
    %v253 = vsub.f32 0.0, %v245
    %v254 = vsub.f32 0.0, %v246
    %v255 = vadd.f32 %v247, %v248
    %v256 = vadd.f32 %v255, %v249
    %v257 = vadd.f32 %v256, %v250
    %v258 = vadd.f32 %v257, %v251
    %v259 = vadd.f32 %v258, %v252
    %v260 = vadd.f32 %v259, %v253
    %v261 = vadd.f32 %v260, %v254
    %262 = vadd.xlane.f32.xlu0 %v261
    %v263 = vpop.xlane.xlu0 %262
    %v264 = vmul.f32 %v207, %v55
    %v265 = vmul.f32 %v208, %v56
    %v266 = vmul.f32 %v209, %v57
    %v267 = vmul.f32 %v210, %v58
    %v268 = vmul.f32 %v211, %v59
    %v269 = vmul.f32 %v212, %v60
    %v270 = vmul.f32 %v213, %v61
    %v271 = vmul.f32 %v214, %v62
    %v272 = vadd.f32 %v264, %v265
    %v273 = vadd.f32 %v272, %v266
    %v274 = vadd.f32 %v273, %v267
    %v275 = vadd.f32 %v274, %v268
    %v276 = vadd.f32 %v275, %v269
    %v277 = vadd.f32 %v276, %v270
    %v278 = vadd.f32 %v277, %v271
    %279 = vadd.xlane.f32.xlu0 %v278
    %v280 = vpop.xlane.xlu0 %279
    %v281 = vadd.f32 %v207, %v208
    %v282 = vadd.f32 %v281, %v209
    %v283 = vadd.f32 %v282, %v210
    %v284 = vadd.f32 %v283, %v211
    %v285 = vadd.f32 %v284, %v212
    %v286 = vadd.f32 %v285, %v213
    %v287 = vadd.f32 %v286, %v214
    %288 = vadd.xlane.f32.xlu0 %v287
    %v289 = vpop.xlane.xlu0 %288
    %v290 = vadd.f32 %v55, %v56
    %v291 = vadd.f32 %v290, %v57
    %v292 = vadd.f32 %v291, %v58
    %v293 = vadd.f32 %v292, %v59
    %v294 = vadd.f32 %v293, %v60
    %v295 = vadd.f32 %v294, %v61
    %v296 = vadd.f32 %v295, %v62
    %297 = vadd.xlane.f32.xlu0 %v296
    %v298 = vpop.xlane.xlu0 %297
    %v299 = vadd.f32 %v289, %v298
    %v300 = vld [vmem:[#allocation7] sm:$0xff]
    %v301 = vadd.f32 %v300, %v263
    %302 = vst [vmem:[#allocation7] sm:$0xff] %v301
    %v303 = vld [vmem:[#allocation8] sm:$0xff]
    %v304 = vadd.f32 %v303, %v280
    %305 = vst [vmem:[#allocation8] sm:$0xff] %v304
    %v306 = vld [vmem:[#allocation10] sm:$0xff]
    %v307 = vadd.f32 %v306, %v299
    %308 = vst [vmem:[#allocation10] sm:$0xff] %v307
    // Predicated region
    $region22: #{tpu_custom_call.1} parent=1 // pred_check
      _
    $region23: #{tpu_custom_call.1} parent=1 // pred_check_branch
      %310 = sbr.rel (0) target = $region25
    $region24: #{tpu_custom_call.1} parent=1 // pred_region
      %s312 = ssub.s32 128, 128
      %313 = vsyncadd [#allocation4], %s312
      %s315 = sshll.u32 [#allocation7], 4
      %s316 = int_to_ptr.vmem [resolvable:$true] %s315
      %318 = dma.vmem_to_hbm [thread:$0]  %s316, 128, %s2, [#allocation4]
    $region25: #{tpu_custom_call.1} parent=1 // pred_fallthru
      _
    // Predicated region
    $region26: #{tpu_custom_call.1} parent=1 // pred_check
      _
    $region27: #{tpu_custom_call.1} parent=1 // pred_check_branch
      %320 = sbr.rel (0) target = $region29
    $region28: #{tpu_custom_call.1} parent=1 // pred_region
      %s322 = ssub.s32 128, 128
      %323 = vsyncadd [#allocation9], %s322
      %s325 = sshll.u32 [#allocation8], 4
      %s326 = int_to_ptr.vmem [resolvable:$true] %s325
      %328 = dma.vmem_to_hbm [thread:$0]  %s326, 128, %s3, [#allocation9]
    $region29: #{tpu_custom_call.1} parent=1 // pred_fallthru
      _
    // Predicated region
    $region30: #{tpu_custom_call.1} parent=1 // pred_check
      _
    $region31: #{tpu_custom_call.1} parent=1 // pred_check_branch
      %330 = sbr.rel (0) target = $region33
    $region32: #{tpu_custom_call.1} parent=1 // pred_region
      %s332 = ssub.s32 128, 128
      %333 = vsyncadd [#allocation9], %s332
      %s335 = sshll.u32 [#allocation10], 4
      %s336 = int_to_ptr.vmem [resolvable:$true] %s335
      %338 = dma.vmem_to_hbm [thread:$0]  %s336, 128, %s4, [#allocation9]
    $region33: #{tpu_custom_call.1} parent=1 // pred_fallthru
      _
    // Predicated region
    $region34: #{tpu_custom_call.1} parent=1 // pred_check
      _
    $region35: #{tpu_custom_call.1} parent=1 // pred_check_branch
      %340 = sbr.rel (0) target = $region37
    $region36: #{tpu_custom_call.1} parent=1 // pred_region
      %341 = dma.done [#allocation4], 128
    $region37: #{tpu_custom_call.1} parent=1 // pred_fallthru
      _
    // Predicated region
    $region38: #{tpu_custom_call.1} parent=1 // pred_check
      _
    $region39: #{tpu_custom_call.1} parent=1 // pred_check_branch
      %343 = sbr.rel (0) target = $region41
    $region40: #{tpu_custom_call.1} parent=1 // pred_region
      %344 = dma.done [#allocation9], 128
    $region41: #{tpu_custom_call.1} parent=1 // pred_fallthru
      _
    // Predicated region
    $region42: #{tpu_custom_call.1} parent=1 // pred_check
      _
    $region43: #{tpu_custom_call.1} parent=1 // pred_check_branch
      %346 = sbr.rel (0) target = $region45
    $region44: #{tpu_custom_call.1} parent=1 // pred_region
      %347 = dma.done [#allocation9], 128
    $region45: #{tpu_custom_call.1} parent=1 // pred_fallthru
      _
    %348 = vsyncpa [#allocation3], 1
    %349 = vsyncpa [#allocation6], 1
    %350 = vsyncpa [#allocation4], 1
    %351 = vsyncpa [#allocation9], 1

</llo_original>
